<compile_context>
chip_gen: v7x
topology: tpu7x:2x2x1
jax: 0.10.0
libtpu: 0.0.40
codegen_flags: <defaults>
</compile_context>

<pallas_src>
import jax
import jax.numpy as jnp
from jax import lax
from jax.experimental import pallas as pl
from jax.experimental.pallas import tpu as pltpu


def _bayesian_nn_kernel(x_ref, w1_ref, b1_ref, w2_ref, b2_ref, o_ref):
    # fc1 on the MXU, consuming x transposed at the operand:
    #   hT[h, b] = sum_k w1[h, k] * x[b, k]   -> (hid, block_b), f32 accumulate.
    hT = lax.dot_general(
        w1_ref[...], x_ref[...],
        dimension_numbers=(((1,), (1,)), ((), ())),
        preferred_element_type=jnp.float32,
    )
    hT = jnp.maximum(hT + b1_ref[...], 0.0)               # bias + ReLU (VPU, f32)
    # fc2 (16 -> 1): VPU multiply + sublane reduction (XLU). Result (1, block_b)
    # is lane-dense, so the output store is a full-width unmasked vst.
    z = jnp.sum(hT * w2_ref[...], axis=0, keepdims=True) + b2_ref[...]
    o_ref[...] = jax.nn.sigmoid(z).astype(o_ref.dtype)    # EUP, f32


def bayesian_nn_forward(x, w1, b1, w2, b2, *, block_b=4096):
    """Fused forward pass of BayesianNN.

    Args (PyTorch nn.Linear conventions):
      x : (B, input_dim) f32
      w1: (hidden, input_dim) f32   (fc1.weight)
      b1: (hidden,)           f32   (fc1.bias)
      w2: (1, hidden)         f32   (fc2.weight)
      b2: (1,)                f32   (fc2.bias)
    Returns: (B, 1) f32 = sigmoid(relu(x @ w1.T + b1) @ w2.T + b2)
    """
    B, in_dim = x.shape
    hid = w1.shape[0]

    # Batch tile: lanes of the output, must be a multiple of 128.
    #   - VMEM-aware cap: keep 2 (double-buffer) * block_b * in_dim * 4 B under
    #     ~8 MiB so the tile fits every generation's default scoped VMEM
    #     (v5e 16 MiB / v6e 32 MiB / v7x 32 MiB) without vmem_limit_bytes.
    #   - Never larger than the batch rounded up to one 128-lane tile.
    vmem_cap_bytes = 8 * 1024 * 1024
    max_block = (vmem_cap_bytes // (2 * in_dim * 4)) // 128 * 128
    block_b = max(128, min(block_b, max(128, max_block), pl.cdiv(B, 128) * 128))
    grid = (pl.cdiv(B, block_b),)          # ragged last block clipped by Pallas

    b1c = b1.reshape(hid, 1)
    w2c = w2.reshape(hid, 1)               # fc2.weight transposed to a column
    b2c = b2.reshape(1, 1)

    cost = pl.CostEstimate(
        flops=2 * B * hid * (in_dim + 1),
        transcendentals=B,
        bytes_accessed=4 * (x.size + w1.size + b1c.size + w2c.size
                            + b2c.size + B),
    )

    out = pl.pallas_call(
        _bayesian_nn_kernel,
        out_shape=jax.ShapeDtypeStruct((1, B), jnp.float32),
        grid_spec=pltpu.PrefetchScalarGridSpec(
            num_scalar_prefetch=0,
            grid=grid,
            in_specs=[
                pl.BlockSpec((block_b, in_dim), lambda i: (i, 0)),   # x (natural layout)
                pl.BlockSpec((hid, in_dim), lambda i: (0, 0)),       # W1 (resident)
                pl.BlockSpec((hid, 1), lambda i: (0, 0)),            # b1 (resident)
                pl.BlockSpec((hid, 1), lambda i: (0, 0)),            # W2 (resident)
                pl.BlockSpec((1, 1), lambda i: (0, 0)),              # b2 (resident)
            ],
            out_specs=pl.BlockSpec((1, block_b), lambda i: (0, i)),  # lane-dense
        ),
        compiler_params=pltpu.CompilerParams(
            dimension_semantics=("parallel",),   # shard batch over v7x's 2 TCs
        ),
        cost_estimate=cost,
    )(x, w1, b1c, w2c, b2c)

    return out.T                              # (1, B) -> (B, 1), layout no-op


def init_params(key, input_dim, hidden=16, out=1):
    """PyTorch nn.Linear-shaped parameters with the default U(-1/sqrt(fan_in)) init."""
    k1, k2, k3, k4 = jax.random.split(key, 4)
    bound1 = 1.0 / jnp.sqrt(input_dim)
    bound2 = 1.0 / jnp.sqrt(hidden)
    w1 = jax.random.uniform(k1, (hidden, input_dim), jnp.float32, -bound1, bound1)
    b1 = jax.random.uniform(k2, (hidden,), jnp.float32, -bound1, bound1)
    w2 = jax.random.uniform(k3, (out, hidden), jnp.float32, -bound2, bound2)
    b2 = jax.random.uniform(k4, (out,), jnp.float32, -bound2, bound2)
    return w1, b1, w2, b2


def _reference(x, w1, b1, w2, b2):
    h = jnp.maximum(x @ w1.T + b1, 0.0)
    return jax.nn.sigmoid(h @ w2.T + b2)


if __name__ == "__main__":
    key = jax.random.PRNGKey(0)
    kx1, kx2, kp = jax.random.split(key, 3)

    input_dim = 32
    w1, b1, w2, b2 = init_params(kp, input_dim)

    # Small batch: single clipped 128-lane block, grid = 1.
    x_small = jax.random.normal(kx1, (8, input_dim), jnp.float32)
    out_small = jax.block_until_ready(bayesian_nn_forward(x_small, w1, b1, w2, b2))
    ref_small = _reference(x_small, w1, b1, w2, b2)
    assert out_small.shape == (8, 1)
    assert jnp.allclose(out_small, ref_small, atol=1e-5, rtol=1e-5)

    # Larger batch with a forced small tile: grid = 4, resident weights across
    # steps, and a ragged (clipped) last block — no wrapper-side pad.
    x_big = jax.random.normal(kx2, (1000, input_dim), jnp.float32)
    out_big = jax.block_until_ready(
        bayesian_nn_forward(x_big, w1, b1, w2, b2, block_b=256))
    ref_big = _reference(x_big, w1, b1, w2, b2)
    assert out_big.shape == (1000, 1)
    assert jnp.allclose(out_big, ref_big, atol=1e-5, rtol=1e-5)

    # Default (large) tile path on the same batch: grid = 1, block_b = 1024.
    out_def = jax.block_until_ready(bayesian_nn_forward(x_big, w1, b1, w2, b2))
    assert jnp.allclose(out_def, ref_big, atol=1e-5, rtol=1e-5)

    print("KERNEL_OK")
</pallas_src>

<mosaic_0001>
module attributes {stable_mosaic.version = 11 : i64} {
  func.func @_bayesian_nn_kernel(%arg0: i32, %arg1: memref<128x32xf32, #tpu.memory_space<vmem>>, %arg2: memref<16x32xf32, #tpu.memory_space<vmem>>, %arg3: memref<16x1xf32, #tpu.memory_space<vmem>>, %arg4: memref<16x1xf32, #tpu.memory_space<vmem>>, %arg5: memref<1x1xf32, #tpu.memory_space<vmem>>, %arg6: memref<1x128xf32, #tpu.memory_space<vmem>>) attributes {dimension_semantics = [#tpu.dimension_semantics<parallel>], iteration_bounds = array<i64: 1>, scalar_prefetch = 0 : i64, scratch_operands = 0 : i64, tpu.core_type = #tpu.core_type<tc>, window_params = [{transform_indices = @transform_0, window_bounds = array<i64: 128, 32>}, {pipeline_mode = #tpu.pipeline_mode<synchronous>, transform_indices = @transform_1, window_bounds = array<i64: 16, 32>}, {pipeline_mode = #tpu.pipeline_mode<synchronous>, transform_indices = @transform_2, window_bounds = array<i64: 16, 1>}, {pipeline_mode = #tpu.pipeline_mode<synchronous>, transform_indices = @transform_3, window_bounds = array<i64: 16, 1>}, {pipeline_mode = #tpu.pipeline_mode<synchronous>, transform_indices = @transform_4, window_bounds = array<i64: 1, 1>}, {transform_indices = @transform_5, window_bounds = array<i64: 1, 128>}]} {
    %c0 = arith.constant 0 : index
    %c0_0 = arith.constant 0 : index
    %0 = vector.load %arg2[%c0, %c0_0] : memref<16x32xf32, #tpu.memory_space<vmem>>, vector<16x32xf32>
    %c0_1 = arith.constant 0 : index
    %c0_2 = arith.constant 0 : index
    %1 = vector.load %arg1[%c0_1, %c0_2] : memref<128x32xf32, #tpu.memory_space<vmem>>, vector<128x32xf32>
    %cst = arith.constant dense<0.000000e+00> : vector<16x128xf32>
    %2 = tpu.matmul %0, %1, %cst {dimension_numbers = #tpu.dot_dimension_numbers<[1], [1], [0], [0], [0, 0, 1, 0], [], []>} : vector<16x32xf32>, vector<128x32xf32>, vector<16x128xf32> -> vector<16x128xf32>
    %c0_3 = arith.constant 0 : index
    %c0_4 = arith.constant 0 : index
    %3 = vector.load %arg3[%c0_3, %c0_4] : memref<16x1xf32, #tpu.memory_space<vmem>>, vector<16x1xf32>
    %4 = vector.broadcast %3 : vector<16x1xf32> to vector<16x128xf32>
    %5 = arith.addf %2, %4 : vector<16x128xf32>
    %cst_5 = arith.constant 0.000000e+00 : f32
    %6 = vector.broadcast %cst_5 : f32 to vector<16x128xf32>
    %7 = arith.maximumf %5, %6 : vector<16x128xf32>
    %c0_6 = arith.constant 0 : index
    %c0_7 = arith.constant 0 : index
    %8 = vector.load %arg4[%c0_6, %c0_7] : memref<16x1xf32, #tpu.memory_space<vmem>>, vector<16x1xf32>
    %9 = vector.broadcast %8 : vector<16x1xf32> to vector<16x128xf32>
    %10 = arith.mulf %7, %9 : vector<16x128xf32>
    %cst_8 = arith.constant dense<0.000000e+00> : vector<128xf32>
    %11 = vector.multi_reduction <add>, %10, %cst_8 [0] : vector<16x128xf32> to vector<128xf32>
    %12 = vector.shape_cast %11 : vector<128xf32> to vector<1x128xf32>
    %c0_9 = arith.constant 0 : index
    %c0_10 = arith.constant 0 : index
    %13 = vector.load %arg5[%c0_9, %c0_10] : memref<1x1xf32, #tpu.memory_space<vmem>>, vector<1x1xf32>
    %14 = vector.broadcast %13 : vector<1x1xf32> to vector<1x128xf32>
    %15 = arith.addf %12, %14 : vector<1x128xf32>
    %16 = arith.negf %15 : vector<1x128xf32>
    %17 = math.exp %16 : vector<1x128xf32>
    %cst_11 = arith.constant 1.000000e+00 : f32
    %18 = vector.broadcast %cst_11 : f32 to vector<1x128xf32>
    %19 = arith.addf %18, %17 : vector<1x128xf32>
    %20 = arith.divf %18, %19 : vector<1x128xf32>
    %c0_12 = arith.constant 0 : index
    %c0_13 = arith.constant 0 : index
    %21 = vector.load %arg6[%c0_12, %c0_13] : memref<1x128xf32, #tpu.memory_space<vmem>>, vector<1x128xf32>
    tpu.vector_store %arg6[%c0_12, %c0_13], %20 {strides = array<i32>} : memref<1x128xf32, #tpu.memory_space<vmem>>, vector<1x128xf32>,
    return
  }
  func.func @transform_0(%arg0: i32) -> (i32, i32) {
    %c0_i32 = arith.constant 0 : i32
    %c0_i32_0 = arith.constant 0 : i32
    return %arg0, %c0_i32 : i32, i32
  }
  func.func @transform_1(%arg0: i32) -> (i32, i32) {
    %c0_i32 = arith.constant 0 : i32
    %c0_i32_0 = arith.constant 0 : i32
    %c0_i32_1 = arith.constant 0 : i32
    return %c0_i32, %c0_i32_0 : i32, i32
  }
  func.func @transform_2(%arg0: i32) -> (i32, i32) {
    %c0_i32 = arith.constant 0 : i32
    %c0_i32_0 = arith.constant 0 : i32
    %c0_i32_1 = arith.constant 0 : i32
    return %c0_i32, %c0_i32_0 : i32, i32
  }
  func.func @transform_3(%arg0: i32) -> (i32, i32) {
    %c0_i32 = arith.constant 0 : i32
    %c0_i32_0 = arith.constant 0 : i32
    %c0_i32_1 = arith.constant 0 : i32
    return %c0_i32, %c0_i32_0 : i32, i32
  }
  func.func @transform_4(%arg0: i32) -> (i32, i32) {
    %c0_i32 = arith.constant 0 : i32
    %c0_i32_0 = arith.constant 0 : i32
    %c0_i32_1 = arith.constant 0 : i32
    return %c0_i32, %c0_i32_0 : i32, i32
  }
  func.func @transform_5(%arg0: i32) -> (i32, i32) {
    %c0_i32 = arith.constant 0 : i32
    %c0_i32_0 = arith.constant 0 : i32
    return %c0_i32, %arg0 : i32, i32
  }
}

</mosaic_0001>

<llo_original>
// kernel: tpu_custom_call.1
$region0: #{tpu_custom_call.1}
  #allocation0 [shape = 'u32[]', space=smem, size = 0x4, offset = 0x4, fixed_abs, tag = 'smem constant byte address 0x4 - core index']
  #allocation1 [shape = 'u32[144,128]{1,0:T(1,128)}', space=vmem, size = 0x12000, scoped, tag = 'internal scratch']
  #allocation2 [shape = 'f32[1,1]{1,0:T(1,128)S(1)}', space=vmem, size = 0x200, scoped, tag = 'scoped memory for tpu_custom_call.1']
  %s0 = inlined_call_operand.vmem [shape: f32[8,32], index: 0, kind: input, shape index: {}]
  %s1 = inlined_call_operand.vmem [shape: f32[16,32], index: 1, kind: input, shape index: {}]
  %s2 = inlined_call_operand.vmem [shape: f32[16,1], index: 2, kind: input, shape index: {}]
  %s3 = inlined_call_operand.vmem [shape: f32[16,1], index: 3, kind: input, shape index: {}]
  %s4 = inlined_call_operand.<no memory space> [shape: f32[1,1], index: 4, kind: input, shape index: {}]
  %s5 = inlined_call_operand.hbm [shape: f32[1,8], index: 5, kind: output, shape index: {}]
  %s6 = sld [smem:[#allocation0]]
  $region30: #{tpu_custom_call.1} parent=0
    _
  %s8 = ssub.s32 1, %s6
  %s9 = scalar_select 0, %s8, %s6
  %v10 = vstv %s4
  %11 = vst [vmem:[#allocation2] sm:$0x1] %v10
  $region1: #{tpu_custom_call.1} parent=0
    #allocation3 [shape = 'u8[512]{0}', space=vmem, size = 0x400, scoped, tag = 'output window, operand 0, single buffered']
    #allocation4 [shape = 's32[1]{0}', space=sflag, size = 0x4, scoped, tag = 'scoped memory for tpu_custom_call.1']
    %12 = vsyncpa [#allocation4], 0
    // Predicated region
    $region2: #{tpu_custom_call.1} parent=1 // pred_check
      _
    $region3: #{tpu_custom_call.1} parent=1 // pred_check_branch
      %14 = sbr.rel (0) target = $region5
    $region4: #{tpu_custom_call.1} parent=1 // pred_region
      _
    $region5: #{tpu_custom_call.1} parent=1 // pred_fallthru
      _
    // Predicated region
    $region6: #{tpu_custom_call.1} parent=1 // pred_check
      _
    $region7: #{tpu_custom_call.1} parent=1 // pred_check_branch
      %16 = sbr.rel (0) target = $region9
    $region8: #{tpu_custom_call.1} parent=1 // pred_region
      _
    $region9: #{tpu_custom_call.1} parent=1 // pred_fallthru
      _
    // Predicated region
    $region10: #{tpu_custom_call.1} parent=1 // pred_check
      _
    $region11: #{tpu_custom_call.1} parent=1 // pred_check_branch
      %18 = sbr.rel (0) target = $region13
    $region12: #{tpu_custom_call.1} parent=1 // pred_region
      _
    $region13: #{tpu_custom_call.1} parent=1 // pred_fallthru
      _
    // Predicated region
    $region14: #{tpu_custom_call.1} parent=1 // pred_check
      _
    $region15: #{tpu_custom_call.1} parent=1 // pred_check_branch
      %20 = sbr.rel (0) target = $region17
    $region16: #{tpu_custom_call.1} parent=1 // pred_region
      _
    $region17: #{tpu_custom_call.1} parent=1 // pred_fallthru
      _
    // Predicated region
    $region18: #{tpu_custom_call.1} parent=1 // pred_check
      _
    $region19: #{tpu_custom_call.1} parent=1 // pred_check_branch
      %22 = sbr.rel (0) target = $region21
    $region20: #{tpu_custom_call.1} parent=1 // pred_region
      _
    $region21: #{tpu_custom_call.1} parent=1 // pred_fallthru
      _
    %v23 = vld [vmem:[%s1] sm:$0xff]
    %v24 = vld [vmem:[%s1 + $0x8] sm:$0xff]
    %v25 = vld [vmem:[%s0] sm:$0xff]
    %v26 = vld [vmem:[%s0 + $0x8] sm:$0xff]
    %v27 = vld [vmem:[%s0 + $0x10] sm:$0xff]
    %v28 = vld [vmem:[%s0 + $0x18] sm:$0xff]
    %v29 = vld [vmem:[%s0 + $0x20] sm:$0xff]
    %v30 = vld [vmem:[%s0 + $0x28] sm:$0xff]
    %v31 = vld [vmem:[%s0 + $0x30] sm:$0xff]
    %v32 = vld [vmem:[%s0 + $0x38] sm:$0xff]
    %v33 = vld [vmem:[%s0 + $0x40] sm:$0xff]
    %v34 = vld [vmem:[%s0 + $0x48] sm:$0xff]
    %v35 = vld [vmem:[%s0 + $0x50] sm:$0xff]
    %v36 = vld [vmem:[%s0 + $0x58] sm:$0xff]
    %v37 = vld [vmem:[%s0 + $0x60] sm:$0xff]
    %v38 = vld [vmem:[%s0 + $0x68] sm:$0xff]
    %v39 = vld [vmem:[%s0 + $0x70] sm:$0xff]
    %v40 = vld [vmem:[%s0 + $0x78] sm:$0xff]
    %v41 = vld [vmem:[%s2] sm:$0xff]
    %v42 = vld [vmem:[%s2 + $0x8] sm:$0xff]
    %44 = vset.pattern.permute.xlu0 0
    %45 = vperm.xlu0 %44, %v41
    %v46 = vpop.permute.xlu0 %45
    %49 = vset.pattern.permute.xlu0 0
    %50 = vperm.xlu0 %49, %v42
    %v51 = vpop.permute.xlu0 %50
    %vm53 = vcmask 261120
    %v55 = vsel %vm53, %v23, 0
    %v58 = vsel %vm53, %v24, 0
    %v61 = vsel %vm53, %v25, 0
    %v64 = vsel %vm53, %v26, 0
    %v67 = vsel %vm53, %v27, 0
    %v70 = vsel %vm53, %v28, 0
    %v73 = vsel %vm53, %v29, 0
    %v76 = vsel %vm53, %v30, 0
    %v79 = vsel %vm53, %v31, 0
    %v82 = vsel %vm53, %v32, 0
    %v85 = vsel %vm53, %v33, 0
    %v88 = vsel %vm53, %v34, 0
    %v91 = vsel %vm53, %v35, 0
    %v94 = vsel %vm53, %v36, 0
    %v97 = vsel %vm53, %v37, 0
    %v100 = vsel %vm53, %v38, 0
    %v103 = vsel %vm53, %v39, 0
    %v106 = vsel %vm53, %v40, 0
    %108 = vmatprep.subr.mxu0 0.0
    %109 = vmatpush1.xpose.msra.mxu0 %v61
    %110 = vmatprep.subr.mxu0 0.0
    %111 = vmatpush1.xpose.msra.mxu0 %v64
    %112 = vmatprep.subr.mxu0 0.0
    %113 = vmatpush1.xpose.msra.mxu0 %v67
    %114 = vmatprep.subr.mxu0 0.0
    %115 = vmatpush1.xpose.msra.mxu0 %v70
    %116 = vmatprep.subr.mxu0 0.0
    %117 = vmatpush1.xpose.msra.mxu0 %v73
    %118 = vmatprep.subr.mxu0 0.0
    %119 = vmatpush1.xpose.msra.mxu0 %v76
    %120 = vmatprep.subr.mxu0 0.0
    %121 = vmatpush1.xpose.msra.mxu0 %v79
    %122 = vmatprep.subr.mxu0 0.0
    %123 = vmatpush1.xpose.msra.mxu0 %v82
    %124 = vmatprep.subr.mxu0 0.0
    %125 = vmatpush1.xpose.msra.mxu0 %v85
    %126 = vmatprep.subr.mxu0 0.0
    %127 = vmatpush1.xpose.msra.mxu0 %v88
    %128 = vmatprep.subr.mxu0 0.0
    %129 = vmatpush1.xpose.msra.mxu0 %v91
    %130 = vmatprep.subr.mxu0 0.0
    %131 = vmatpush1.xpose.msra.mxu0 %v94
    %132 = vmatprep.subr.mxu0 0.0
    %133 = vmatpush1.xpose.msra.mxu0 %v97
    %134 = vmatprep.subr.mxu0 0.0
    %135 = vmatpush1.xpose.msra.mxu0 %v100
    %136 = vmatprep.subr.mxu0 0.0
    %137 = vmatpush1.xpose.msra.mxu0 %v103
    %138 = vmatprep.subr.mxu0 0.0
    %139 = vmatpush1.xpose.msra.mxu0 %v106
    %140 = vmatprep.subr.mxu0 0.0
    %141 = vmatpush1.xpose.msra.mxu0 0.0
    %142 = vmatprep.subr.mxu0 0.0
    %143 = vmatpush1.xpose.msra.mxu0 0.0
    %144 = vmatprep.subr.mxu0 0.0
    %145 = vmatpush1.xpose.msra.mxu0 0.0
    %146 = vmatprep.subr.mxu0 0.0
    %147 = vmatpush1.xpose.msra.mxu0 0.0
    %148 = vmatprep.subr.mxu0 0.0
    %149 = vmatpush1.xpose.msra.mxu0 0.0
    %150 = vmatprep.subr.mxu0 0.0
    %151 = vmatpush1.xpose.msra.mxu0 0.0
    %152 = vmatprep.subr.mxu0 0.0
    %153 = vmatpush1.xpose.msra.mxu0 0.0
    %154 = vmatprep.subr.mxu0 0.0
    %155 = vmatpush1.xpose.msra.mxu0 0.0
    %156 = vmatprep.subr.mxu0 0.0
    %157 = vmatpush1.xpose.msra.mxu0 0.0
    %158 = vmatprep.subr.mxu0 0.0
    %159 = vmatpush1.xpose.msra.mxu0 0.0
    %160 = vmatprep.subr.mxu0 0.0
    %161 = vmatpush1.xpose.msra.mxu0 0.0
    %162 = vmatprep.subr.mxu0 0.0
    %163 = vmatpush1.xpose.msra.mxu0 0.0
    %164 = vmatprep.subr.mxu0 0.0
    %165 = vmatpush1.xpose.msra.mxu0 0.0
    %166 = vmatprep.subr.mxu0 0.0
    %167 = vmatpush1.xpose.msra.mxu0 0.0
    %168 = vmatprep.subr.mxu0 0.0
    %169 = vmatpush1.xpose.msra.mxu0 0.0
    %170 = vmatprep.subr.mxu0 0.0
    %171 = vmatpush1.xpose.msra.mxu0 0.0
    %172 = vmatprep.mubr.f32.mxu0 0.0
    %173 = vmatmul.mubr.f32.gmra.mrb[0].mxu0 %v55
    %v174 = vpop.f32.mrb[0].mxu0
    %v175 = vadd.f32 %v46, %v174
    %v176 = vpop.f32.mrb[0].mxu0
    %177 = vmatprep.mubr.f32.mxu0 0.0
    %178 = vmatmul.mubr.f32.gmra.mrb[0].mxu0 %v58
    %v179 = vpop.f32.mrb[0].mxu0
    %v180 = vadd.f32 %v51, %v179
    %v181 = vpop.f32.mrb[0].mxu0
    %182 = vdwg.mxu0
    %v183 = vmax.f32 %v175, 0.0
    %v184 = vmax.f32 %v180, 0.0
    %v185 = vld [vmem:[%s3] sm:$0xff]
    %v186 = vld [vmem:[%s3 + $0x8] sm:$0xff]
    %188 = vset.pattern.permute.xlu0 0
    %189 = vperm.xlu0 %188, %v185
    %v190 = vpop.permute.xlu0 %189
    %193 = vset.pattern.permute.xlu0 0
    %194 = vperm.xlu0 %193, %v186
    %v195 = vpop.permute.xlu0 %194
    %v197 = vmul.f32 %v183, %v190
    %v198 = vmul.f32 %v184, %v195
    %v199 = vadd.f32 %v197, %v198
    %v200 = vrot.slane %v199, 4
    %v201 = vadd.f32 %v199, %v200
    %v202 = vrot.slane %v201, 2
    %v203 = vadd.f32 %v201, %v202
    %v204 = vrot.slane %v203, 1
    %v205 = vadd.f32 %v203, %v204
    %v206 = vld [vmem:[#allocation2] sm:$0x1]
    %208 = vset.pattern.permute.xlu0 0
    %209 = vperm.xlu0 %208, %v206
    %v210 = vpop.permute.xlu0 %209
    %v212 = vlaneseq
    %v213 = vshrl.u32 %v212, 7
    %v214 = vsub.s32 0, %v213
    %v215 = vrot.slane %v210, %v214
    %v216 = vadd.f32 %v205, %v215
    %v217 = vxor.u32 %v216, 2147483648
    %v218 = vmul.f32 %v217, 1.442695
    %v219 = vpow.pop %v218
    %v220 = vadd.f32 %v219, 1.0
    %v221 = vrcp.pop %v220
    %v222 = vmul.f32 1.0, %v221
    %223 = vst [vmem:[#allocation3] sm:$0x1] %v222
    // Predicated region
    $region22: #{tpu_custom_call.1} parent=1 // pred_check
      _
    $region23: #{tpu_custom_call.1} parent=1 // pred_check_branch
      %225 = sbr.rel (0) target = $region25
    $region24: #{tpu_custom_call.1} parent=1 // pred_region
      %s227 = ssub.s32 16, 16
      %228 = vsyncadd [#allocation4], %s227
      %s230 = sshll.u32 [#allocation3], 4
      %s231 = int_to_ptr.vmem [resolvable:$true] %s230
      %233 = dma.vmem_to_hbm [thread:$0]  %s231, 16, %s5, [#allocation4]
    $region25: #{tpu_custom_call.1} parent=1 // pred_fallthru
      _
    // Predicated region
    $region26: #{tpu_custom_call.1} parent=1 // pred_check
      _
    $region27: #{tpu_custom_call.1} parent=1 // pred_check_branch
      %235 = sbr.rel (0) target = $region29
    $region28: #{tpu_custom_call.1} parent=1 // pred_region
      %236 = dma.done [#allocation4], 16
    $region29: #{tpu_custom_call.1} parent=1 // pred_fallthru
      _
    %237 = vsyncpa [#allocation4], 1

</llo_original>
